<compile_context>
chip_gen: v7x
topology: tpu7x:2x2x1
jax: 0.10.0
libtpu: 0.0.40
codegen_flags: <defaults>
</compile_context>

<pallas_src>
import jax
import jax.numpy as jnp
from jax import lax
from jax.experimental import pallas as pl
from jax.experimental.pallas import tpu as pltpu


# ---------------------------------------------------------------------------
# Chip profile (generation-aware tiling / VMEM budgets)
# ---------------------------------------------------------------------------

_CHIP_PROFILE = None


def _chip_profile():
    """Returns (vmem_capacity_bytes, mxu_is_256_wide, has_two_tensorcores)."""
    global _CHIP_PROFILE
    if _CHIP_PROFILE is not None:
        return _CHIP_PROFILE
    kind = ""
    try:
        kind = jax.devices()[0].device_kind.lower()
    except Exception:
        pass
    is_v7 = "v7" in kind
    mxu_256 = is_v7 or ("v6" in kind)
    vmem_cap = (64 << 20) if is_v7 else (128 << 20)
    try:  # refine from the hardware query when available
        cap = int(pltpu.get_tpu_info().vmem_capacity_bytes)
        if cap > 0:
            vmem_cap = cap
    except Exception:
        pass
    _CHIP_PROFILE = (vmem_cap, mxu_256, is_v7)
    return _CHIP_PROFILE


def _round_up(x, m):
    return ((x + m - 1) // m) * m


def _pick_tile(dim_pad, candidates):
    """Largest candidate tile that evenly divides dim_pad (fallback: dim_pad)."""
    for c in candidates:
        if c <= dim_pad and dim_pad % c == 0:
            return c
    return dim_pad


def _padded_n(n):
    """Zero-padded feature size: lane-dense; 256-aligned on 256-wide-MXU chips."""
    _, mxu_256, _ = _chip_profile()
    align = 256 if (mxu_256 and n > 128) else 128
    return _round_up(n, align)


# ---------------------------------------------------------------------------
# Kernels
# ---------------------------------------------------------------------------

def _kernel_single_k(s_ref, x_ref, w_ref, gamma_ref, i_ref, o_ref):
    """Whole contraction in one MXU block (k_tiles == 1), no predicates."""
    acc = lax.dot_general(
        s_ref[...], w_ref[...],
        dimension_numbers=(((1,), (1,)), ((), ())),   # contract dim 1 of both == s @ W.T
        preferred_element_type=jnp.float32,
    )
    i_term = jnp.exp(jnp.minimum(i_ref[...], 10.0))      # (1, tn), EUP
    g_term = jnp.exp(jnp.minimum(gamma_ref[...], 10.0))  # (1, tn), EUP
    o_ref[...] = (acc + i_term - g_term * x_ref[...]).astype(o_ref.dtype)


def _kernel_k_tiled(s_ref, x_ref, w_ref, gamma_ref, i_ref, o_ref):
    """k-tiled contraction accumulating directly into the f32 output block."""
    k = pl.program_id(2)
    contrib = lax.dot_general(
        s_ref[...], w_ref[...],
        dimension_numbers=(((1,), (1,)), ((), ())),
        preferred_element_type=jnp.float32,
    )

    @pl.when(k == 0)
    def _():
        o_ref[...] = contrib

    @pl.when(k > 0)
    def _():
        o_ref[...] += contrib

    @pl.when(k == pl.num_programs(2) - 1)
    def _():
        i_term = jnp.exp(jnp.minimum(i_ref[...], 10.0))
        g_term = jnp.exp(jnp.minimum(gamma_ref[...], 10.0))
        o_ref[...] += i_term - g_term * x_ref[...]


# ---------------------------------------------------------------------------
# Wrapper
# ---------------------------------------------------------------------------

def _pad2(a, rows, cols, dtype):
    a = a.astype(dtype)
    if a.shape == (rows, cols):
        return a
    return jnp.zeros((rows, cols), dtype).at[: a.shape[0], : a.shape[1]].set(a)


def prepare_weight(w, *, matmul_dtype=jnp.float32):
    """Pad/cast the (n, n) nn.Linear weight once; reuse across forward calls.

    Passing the prepared weight to scaffold_forward avoids a full extra HBM
    read+write (and cast) of W on every call.
    """
    n = w.shape[0]
    n_pad = _padded_n(n)
    return _pad2(w, n_pad, n_pad, matmul_dtype)


_SINGLE_BUFFER_OK = None  # lazily detected support for pipeline_mode=pl.Buffered(1)


def scaffold_forward(s, x, w, gamma, i_param, *,
                     matmul_dtype=jnp.float32, max_tile=None):
    """out = s @ W.T + exp(min(I,10)) - exp(min(gamma,10)) * x   (f32 result).

    Args:
      s, x:      (batch, n) float32 activations.
      w:         (n, n) float32 nn.Linear weight (out_features, in_features) layout,
                 or a weight already prepared with `prepare_weight`.
      gamma:     (n,) float32.
      i_param:   (n,) float32.
      matmul_dtype: MXU operand dtype for s / W.  jnp.bfloat16 halves the W HBM
                 stream and uses the fast bf16 MXU on v6e/v7x; accumulation and
                 the exp/sub epilogue stay f32.  Opt-in (f32 default) for
                 bit-level parity with the reference.
      max_tile:  optional cap on the tn/tk tiles (testing / sweeps).
    """
    global _SINGLE_BUFFER_OK

    batch, n = s.shape
    assert x.shape == (batch, n)

    vmem_cap, _, two_tc = _chip_profile()
    big_vmem = vmem_cap >= (96 << 20)

    mm_bytes = jnp.dtype(matmul_dtype).itemsize
    sub = 16 if mm_bytes == 2 else 8

    n_pad = _padded_n(n)

    # Generation-aware tile candidates: v5e/v6e (128 MiB VMEM) can run larger
    # tiles; v7x (64 MiB) stays on the smaller budget.
    candidates = (1024, 512, 256, 128) if big_vmem else (512, 256, 128)
    if max_tile is not None:
        candidates = tuple(c for c in candidates if c <= max_tile) or (128,)
    tn = _pick_tile(n_pad, candidates)
    tk = _pick_tile(n_pad, candidates)

    tb_cap = 1024 if big_vmem else 512
    tb = min(_round_up(batch, sub), tb_cap)
    batch_pad = _round_up(batch, tb)

    # v7x megacore: ensure >= 2 blocks on the parallel axes so both TCs get work.
    if two_tc and batch_pad // tb == 1 and n_pad // tn == 1 and n_pad >= 256:
        half_candidates = tuple(c for c in candidates if c <= n_pad // 2)
        tn = _pick_tile(n_pad, half_candidates) if half_candidates else n_pad // 2

    # Activations padded per call; the weight only if it was not prepared.
    s_p = _pad2(s, batch_pad, n_pad, matmul_dtype)
    x_p = _pad2(x, batch_pad, n_pad, jnp.float32)
    gamma_p = _pad2(gamma.reshape(1, n), 1, n_pad, jnp.float32)
    i_p = _pad2(i_param.reshape(1, n), 1, n_pad, jnp.float32)
    if w.shape == (n_pad, n_pad) and w.dtype == jnp.dtype(matmul_dtype):
        w_p = w                                   # already prepared (cached)
    else:
        w_p = _pad2(w, n_pad, n_pad, matmul_dtype)

    b_tiles = batch_pad // tb
    j_tiles = n_pad // tn
    k_tiles = n_pad // tk

    out_shape = jax.ShapeDtypeStruct((batch_pad, n_pad), jnp.float32)

    def vmem_limit(x_bufs):
        footprint = (2 * tb * tk * mm_bytes          # s (double buffered)
                     + 2 * tn * tk * mm_bytes        # W (double buffered)
                     + x_bufs * tb * tn * 4          # x
                     + x_bufs * 2 * 8 * tn * 4       # gamma + I (sublane padded)
                     + 2 * tb * tn * 4)              # out (doubles as f32 accumulator)
        cap = min(int(vmem_cap * 0.75), 100 << 20)   # ~48 MiB on v7x, ~96-100 MiB else
        return int(min(max(int(footprint * 1.25), 32 << 20), cap))

    if k_tiles == 1:
        # Degenerate reduction: one MXU block per (b, j); no accumulator predicates.
        out_pad = pl.pallas_call(
            _kernel_single_k,
            out_shape=out_shape,
            grid=(b_tiles, j_tiles),
            in_specs=[
                pl.BlockSpec((tb, n_pad), lambda b, j: (b, 0)),   # s
                pl.BlockSpec((tb, tn), lambda b, j: (b, j)),      # x
                pl.BlockSpec((tn, n_pad), lambda b, j: (j, 0)),   # W (out, in) layout
                pl.BlockSpec((1, tn), lambda b, j: (0, j)),       # gamma
                pl.BlockSpec((1, tn), lambda b, j: (0, j)),       # I
            ],
            out_specs=pl.BlockSpec((tb, tn), lambda b, j: (b, j)),
            compiler_params=pltpu.CompilerParams(
                dimension_semantics=("parallel", "parallel"),
                vmem_limit_bytes=vmem_limit(2),
            ),
        )(s_p, x_p, w_p, gamma_p, i_p)
    else:
        def run(single_buffer_invariants):
            inv = (dict(pipeline_mode=pl.Buffered(1))
                   if single_buffer_invariants else {})
            return pl.pallas_call(
                _kernel_k_tiled,
                out_shape=out_shape,
                grid=(b_tiles, j_tiles, k_tiles),
                in_specs=[
                    pl.BlockSpec((tb, tk), lambda b, j, k: (b, k)),          # s
                    pl.BlockSpec((tb, tn), lambda b, j, k: (b, j), **inv),   # x (k-invariant)
                    pl.BlockSpec((tn, tk), lambda b, j, k: (j, k)),          # W (out, in)
                    pl.BlockSpec((1, tn), lambda b, j, k: (0, j), **inv),    # gamma
                    pl.BlockSpec((1, tn), lambda b, j, k: (0, j), **inv),    # I
                ],
                out_specs=pl.BlockSpec((tb, tn), lambda b, j, k: (b, j)),
                compiler_params=pltpu.CompilerParams(
                    dimension_semantics=("parallel", "parallel", "arbitrary"),
                    vmem_limit_bytes=vmem_limit(1 if single_buffer_invariants else 2),
                ),
            )(s_p, x_p, w_p, gamma_p, i_p)

        if _SINGLE_BUFFER_OK is None:
            try:
                out_pad = run(True)
                _SINGLE_BUFFER_OK = True
            except Exception:
                _SINGLE_BUFFER_OK = False
                out_pad = run(False)
        else:
            out_pad = run(_SINGLE_BUFFER_OK)

    if (batch_pad, n_pad) != (batch, n):
        return out_pad[:batch, :n]
    return out_pad


def reference_forward(s, x, w, gamma, i_param):
    gamma_clamped = jnp.exp(jnp.minimum(gamma, 10.0))
    i_clamped = jnp.exp(jnp.minimum(i_param, 10.0))
    return s @ w.T + i_clamped[None, :] - gamma_clamped[None, :] * x


# TODO(synk): train_model / Adam / the MaskedLinearLayer gradient-mask hook are
# training-time (backward) machinery with no forward-pass Pallas equivalent.

if __name__ == "__main__":
    key = jax.random.PRNGKey(0)

    def make_problem(key, batch, n):
        k_g, k_i, k_w, k_s, k_x = jax.random.split(key, 5)
        g = jax.random.uniform(k_g, (n,), jnp.float32, 0.1, 1.0)       # gamma buffer
        i_param = jax.random.uniform(k_i, (n,), jnp.float32, 0.0, 1.0)  # nn.Parameter(rand(n))
        bound = jnp.sqrt(6.0 / (n + n))                                 # xavier_uniform
        w = jax.random.uniform(k_w, (n, n), jnp.float32, -bound, bound)
        s = jax.random.normal(k_s, (batch, n), jnp.float32)
        x = jax.random.normal(k_x, (batch, n), jnp.float32)
        return s, x, w, g, i_param

    k0, k1 = jax.random.split(key)

    # 1) Module-like small shape (batch=8, n=32): single-tile path, exact f32.
    s, x, w, gamma, i_param = make_problem(k0, batch=8, n=32)
    ref = reference_forward(s, x, w, gamma, i_param)
    out = jax.block_until_ready(scaffold_forward(s, x, w, gamma, i_param))
    assert out.shape == (8, 32)
    assert jnp.allclose(out, ref, atol=1e-4, rtol=1e-4), "f32 path mismatch vs reference"

    # 2) bf16 MXU-operand path with the weight prepared once (cached pad + cast).
    w_prep = prepare_weight(w, matmul_dtype=jnp.bfloat16)
    out_bf16 = jax.block_until_ready(
        scaffold_forward(s, x, w_prep, gamma, i_param, matmul_dtype=jnp.bfloat16))
    assert out_bf16.shape == (8, 32)
    assert jnp.allclose(out_bf16, ref, atol=5e-2, rtol=5e-2), "bf16 path mismatch vs reference"

    # 3) k-tiled accumulation path (tiles capped so the reduction grid > 1).
    s2, x2, w2, gamma2, i2 = make_problem(k1, batch=16, n=160)
    ref2 = reference_forward(s2, x2, w2, gamma2, i2)
    out2 = jax.block_until_ready(
        scaffold_forward(s2, x2, w2, gamma2, i2, max_tile=128))
    assert out2.shape == (16, 160)
    assert jnp.allclose(out2, ref2, atol=1e-3, rtol=1e-3), "k-tiled path mismatch vs reference"

    print("KERNEL_OK")
</pallas_src>

<mosaic_0001>
module attributes {stable_mosaic.version = 11 : i64} {
  func.func @_kernel_single_k(%arg0: i32, %arg1: i32, %arg2: memref<8x128xf32, #tpu.memory_space<vmem>>, %arg3: memref<8x128xf32, #tpu.memory_space<vmem>>, %arg4: memref<128x128xf32, #tpu.memory_space<vmem>>, %arg5: memref<1x128xf32, #tpu.memory_space<vmem>>, %arg6: memref<1x128xf32, #tpu.memory_space<vmem>>, %arg7: memref<8x128xf32, #tpu.memory_space<vmem>>) attributes {dimension_semantics = [#tpu.dimension_semantics<parallel>, #tpu.dimension_semantics<parallel>], iteration_bounds = array<i64: 1, 1>, scalar_prefetch = 0 : i64, scratch_operands = 0 : i64, tpu.core_type = #tpu.core_type<tc>, window_params = [{transform_indices = @transform_0, window_bounds = array<i64: 8, 128>}, {transform_indices = @transform_1, window_bounds = array<i64: 8, 128>}, {transform_indices = @transform_2, window_bounds = array<i64: 128, 128>}, {transform_indices = @transform_3, window_bounds = array<i64: 1, 128>}, {transform_indices = @transform_4, window_bounds = array<i64: 1, 128>}, {transform_indices = @transform_5, window_bounds = array<i64: 8, 128>}]} {
    %c0 = arith.constant 0 : index
    %c0_0 = arith.constant 0 : index
    %0 = vector.load %arg2[%c0, %c0_0] : memref<8x128xf32, #tpu.memory_space<vmem>>, vector<8x128xf32>
    %c0_1 = arith.constant 0 : index
    %c0_2 = arith.constant 0 : index
    %1 = vector.load %arg4[%c0_1, %c0_2] : memref<128x128xf32, #tpu.memory_space<vmem>>, vector<128x128xf32>
    %cst = arith.constant dense<0.000000e+00> : vector<8x128xf32>
    %2 = tpu.matmul %0, %1, %cst {dimension_numbers = #tpu.dot_dimension_numbers<[1], [1], [0], [0], [0, 0, 1, 0], [], []>} : vector<8x128xf32>, vector<128x128xf32>, vector<8x128xf32> -> vector<8x128xf32>
    %c0_3 = arith.constant 0 : index
    %c0_4 = arith.constant 0 : index
    %3 = vector.load %arg6[%c0_3, %c0_4] : memref<1x128xf32, #tpu.memory_space<vmem>>, vector<1x128xf32>
    %cst_5 = arith.constant 1.000000e+01 : f32
    %4 = vector.broadcast %cst_5 : f32 to vector<1x128xf32>
    %5 = arith.minimumf %3, %4 : vector<1x128xf32>
    %6 = math.exp %5 : vector<1x128xf32>
    %c0_6 = arith.constant 0 : index
    %c0_7 = arith.constant 0 : index
    %7 = vector.load %arg5[%c0_6, %c0_7] : memref<1x128xf32, #tpu.memory_space<vmem>>, vector<1x128xf32>
    %cst_8 = arith.constant 1.000000e+01 : f32
    %8 = vector.broadcast %cst_8 : f32 to vector<1x128xf32>
    %9 = arith.minimumf %7, %8 : vector<1x128xf32>
    %10 = math.exp %9 : vector<1x128xf32>
    %11 = vector.broadcast %6 : vector<1x128xf32> to vector<8x128xf32>
    %12 = arith.addf %2, %11 : vector<8x128xf32>
    %c0_9 = arith.constant 0 : index
    %c0_10 = arith.constant 0 : index
    %13 = vector.load %arg3[%c0_9, %c0_10] : memref<8x128xf32, #tpu.memory_space<vmem>>, vector<8x128xf32>
    %14 = vector.broadcast %10 : vector<1x128xf32> to vector<8x128xf32>
    %15 = arith.mulf %14, %13 : vector<8x128xf32>
    %16 = arith.subf %12, %15 : vector<8x128xf32>
    %c0_11 = arith.constant 0 : index
    %c0_12 = arith.constant 0 : index
    %17 = vector.load %arg7[%c0_11, %c0_12] : memref<8x128xf32, #tpu.memory_space<vmem>>, vector<8x128xf32>
    tpu.vector_store %arg7[%c0_11, %c0_12], %16 {strides = array<i32>} : memref<8x128xf32, #tpu.memory_space<vmem>>, vector<8x128xf32>,
    return
  }
  func.func @transform_0(%arg0: i32, %arg1: i32) -> (i32, i32) {
    %c0_i32 = arith.constant 0 : i32
    %c0_i32_0 = arith.constant 0 : i32
    return %arg0, %c0_i32 : i32, i32
  }
  func.func @transform_1(%arg0: i32, %arg1: i32) -> (i32, i32) {
    %c0_i32 = arith.constant 0 : i32
    return %arg0, %arg1 : i32, i32
  }
  func.func @transform_2(%arg0: i32, %arg1: i32) -> (i32, i32) {
    %c0_i32 = arith.constant 0 : i32
    %c0_i32_0 = arith.constant 0 : i32
    return %arg1, %c0_i32 : i32, i32
  }
  func.func @transform_3(%arg0: i32, %arg1: i32) -> (i32, i32) {
    %c0_i32 = arith.constant 0 : i32
    %c0_i32_0 = arith.constant 0 : i32
    return %c0_i32, %arg1 : i32, i32
  }
  func.func @transform_4(%arg0: i32, %arg1: i32) -> (i32, i32) {
    %c0_i32 = arith.constant 0 : i32
    %c0_i32_0 = arith.constant 0 : i32
    return %c0_i32, %arg1 : i32, i32
  }
  func.func @transform_5(%arg0: i32, %arg1: i32) -> (i32, i32) {
    %c0_i32 = arith.constant 0 : i32
    return %arg0, %arg1 : i32, i32
  }
}

</mosaic_0001>

<llo_original>
// kernel: tpu_custom_call.1
$region0: #{tpu_custom_call.1}
  #allocation0 [shape = 'u32[]', space=smem, size = 0x4, offset = 0x4, fixed_abs, tag = 'smem constant byte address 0x4 - core index']
  #allocation1 [shape = 'u32[144,128]{1,0:T(1,128)}', space=vmem, size = 0x12000, scoped, tag = 'internal scratch']
  %s0 = inlined_call_operand.hbm [shape: f32[8,128], index: 0, kind: input, shape index: {}]
  %s1 = inlined_call_operand.hbm [shape: f32[8,128], index: 1, kind: input, shape index: {}]
  %s2 = inlined_call_operand.hbm [shape: f32[128,128], index: 2, kind: input, shape index: {}]
  %s3 = inlined_call_operand.vmem [shape: f32[1,128], index: 3, kind: input, shape index: {}]
  %s4 = inlined_call_operand.vmem [shape: f32[1,128], index: 4, kind: input, shape index: {}]
  %s5 = inlined_call_operand.hbm [shape: f32[8,128], index: 5, kind: output, shape index: {}]
  %s6 = sld [smem:[#allocation0]]
  $region42: #{tpu_custom_call.1} parent=0
    _
  %s8 = ssub.s32 1, %s6
  %s9 = scalar_select 0, %s8, %s6
  $region1: #{tpu_custom_call.1} parent=0
    #allocation2 [shape = 'u8[4096]{0}', space=vmem, size = 0x1000, scoped, tag = 'input window, operand 0, single buffered']
    #allocation3 [shape = 's32[1]{0}', space=sflag, size = 0x4, scoped, tag = 'scoped memory for tpu_custom_call.1']
    #allocation4 [shape = 's32[1]{0}', space=sflag, size = 0x4, scoped, tag = 'scoped memory for tpu_custom_call.1']
    #allocation5 [shape = 'u8[4096]{0}', space=vmem, size = 0x1000, scoped, tag = 'input window, operand 1, single buffered']
    #allocation6 [shape = 's32[1]{0}', space=sflag, size = 0x4, scoped, tag = 'scoped memory for tpu_custom_call.1']
    #allocation7 [shape = 'u8[65536]{0}', space=vmem, size = 0x10000, scoped, tag = 'input window, operand 2, single buffered']
    #allocation8 [shape = 'u8[4096]{0}', space=vmem, size = 0x1000, scoped, tag = 'output window, operand 0, single buffered']
    %10 = vsyncpa [#allocation3], 0
    %11 = vsyncpa [#allocation6], 0
    %12 = vsyncpa [#allocation4], 0
    // Predicated region
    $region2: #{tpu_custom_call.1} parent=1 // pred_check
      _
    $region3: #{tpu_custom_call.1} parent=1 // pred_check_branch
      %14 = sbr.rel (0) target = $region5
    $region4: #{tpu_custom_call.1} parent=1 // pred_region
      %s16 = ssub.s32 128, 128
      %17 = vsyncadd [#allocation3], %s16
      %s19 = sshll.u32 [#allocation2], 4
      %s20 = int_to_ptr.vmem [resolvable:$true] %s19
      %22 = dma.hbm_to_vmem [thread:$0]  %s0, 128, %s20, [#allocation3]
    $region5: #{tpu_custom_call.1} parent=1 // pred_fallthru
      _
    // Predicated region
    $region6: #{tpu_custom_call.1} parent=1 // pred_check
      _
    $region7: #{tpu_custom_call.1} parent=1 // pred_check_branch
      %24 = sbr.rel (0) target = $region9
    $region8: #{tpu_custom_call.1} parent=1 // pred_region
      %s26 = ssub.s32 128, 128
      %27 = vsyncadd [#allocation6], %s26
      %s29 = sshll.u32 [#allocation5], 4
      %s30 = int_to_ptr.vmem [resolvable:$true] %s29
      %32 = dma.hbm_to_vmem [thread:$0]  %s1, 128, %s30, [#allocation6]
    $region9: #{tpu_custom_call.1} parent=1 // pred_fallthru
      _
    // Predicated region
    $region10: #{tpu_custom_call.1} parent=1 // pred_check
      _
    $region11: #{tpu_custom_call.1} parent=1 // pred_check_branch
      %34 = sbr.rel (0) target = $region13
    $region12: #{tpu_custom_call.1} parent=1 // pred_region
      %s36 = ssub.s32 2048, 2048
      %37 = vsyncadd [#allocation6], %s36
      %s38 = sshll.u32 [#allocation7], 4
      %s39 = int_to_ptr.vmem [resolvable:$true] %s38
      %44 = dma.hbm_to_vmem [thread:$0]  %s2, 2048, %s39, [#allocation6], 128, 128, 8
    $region13: #{tpu_custom_call.1} parent=1 // pred_fallthru
      _
    // Predicated region
    $region14: #{tpu_custom_call.1} parent=1 // pred_check
      _
    $region15: #{tpu_custom_call.1} parent=1 // pred_check_branch
      %46 = sbr.rel (0) target = $region17
    $region16: #{tpu_custom_call.1} parent=1 // pred_region
      _
    $region17: #{tpu_custom_call.1} parent=1 // pred_fallthru
      _
    // Predicated region
    $region18: #{tpu_custom_call.1} parent=1 // pred_check
      _
    $region19: #{tpu_custom_call.1} parent=1 // pred_check_branch
      %48 = sbr.rel (0) target = $region21
    $region20: #{tpu_custom_call.1} parent=1 // pred_region
      _
    $region21: #{tpu_custom_call.1} parent=1 // pred_fallthru
      _
    // Predicated region
    $region22: #{tpu_custom_call.1} parent=1 // pred_check
      _
    $region23: #{tpu_custom_call.1} parent=1 // pred_check_branch
      %50 = sbr.rel (0) target = $region25
    $region24: #{tpu_custom_call.1} parent=1 // pred_region
      %51 = dma.done [#allocation3], 128
    $region25: #{tpu_custom_call.1} parent=1 // pred_fallthru
      _
    // Predicated region
    $region26: #{tpu_custom_call.1} parent=1 // pred_check
      _
    $region27: #{tpu_custom_call.1} parent=1 // pred_check_branch
      %53 = sbr.rel (0) target = $region29
    $region28: #{tpu_custom_call.1} parent=1 // pred_region
      %54 = dma.done [#allocation6], 128
    $region29: #{tpu_custom_call.1} parent=1 // pred_fallthru
      _
    // Predicated region
    $region30: #{tpu_custom_call.1} parent=1 // pred_check
      _
    $region31: #{tpu_custom_call.1} parent=1 // pred_check_branch
      %56 = sbr.rel (0) target = $region33
    $region32: #{tpu_custom_call.1} parent=1 // pred_region
      %57 = dma.done [#allocation6], 2048
    $region33: #{tpu_custom_call.1} parent=1 // pred_fallthru
      _
    %v58 = vld [vmem:[#allocation2] sm:$0xff]
    %v59 = vld [vmem:[#allocation7] sm:$0xff]
    %v60 = vld [vmem:[#allocation7 + $0x8] sm:$0xff]
    %v61 = vld [vmem:[#allocation7 + $0x10] sm:$0xff]
    %v62 = vld [vmem:[#allocation7 + $0x18] sm:$0xff]
    %v63 = vld [vmem:[#allocation7 + $0x20] sm:$0xff]
    %v64 = vld [vmem:[#allocation7 + $0x28] sm:$0xff]
    %v65 = vld [vmem:[#allocation7 + $0x30] sm:$0xff]
    %v66 = vld [vmem:[#allocation7 + $0x38] sm:$0xff]
    %v67 = vld [vmem:[#allocation7 + $0x40] sm:$0xff]
    %v68 = vld [vmem:[#allocation7 + $0x48] sm:$0xff]
    %v69 = vld [vmem:[#allocation7 + $0x50] sm:$0xff]
    %v70 = vld [vmem:[#allocation7 + $0x58] sm:$0xff]
    %v71 = vld [vmem:[#allocation7 + $0x60] sm:$0xff]
    %v72 = vld [vmem:[#allocation7 + $0x68] sm:$0xff]
    %v73 = vld [vmem:[#allocation7 + $0x70] sm:$0xff]
    %v74 = vld [vmem:[#allocation7 + $0x78] sm:$0xff]
    %v75 = vld [vmem:[%s4] sm:$0x1]
    %v76 = vmin.f32 %v75, 10.0
    %v77 = vmul.f32 %v76, 1.442695
    %v78 = vpow.pop %v77
    %v79 = vld [vmem:[%s3] sm:$0x1]
    %v80 = vmin.f32 %v79, 10.0
    %v81 = vmul.f32 %v80, 1.442695
    %v82 = vpow.pop %v81
    %v84 = vlaneseq
    %v85 = vshrl.u32 %v84, 7
    %v86 = vsub.s32 0, %v85
    %v87 = vrot.slane %v78, %v86
    %89 = vmatprep.subr.mxu0 0.0
    %90 = vmatpush1.xpose.msra.mxu0 %v59
    %91 = vmatprep.subr.mxu0 0.0
    %92 = vmatpush1.xpose.msra.mxu0 %v60
    %93 = vmatprep.subr.mxu0 0.0
    %94 = vmatpush1.xpose.msra.mxu0 %v61
    %95 = vmatprep.subr.mxu0 0.0
    %96 = vmatpush1.xpose.msra.mxu0 %v62
    %97 = vmatprep.subr.mxu0 0.0
    %98 = vmatpush1.xpose.msra.mxu0 %v63
    %99 = vmatprep.subr.mxu0 0.0
    %100 = vmatpush1.xpose.msra.mxu0 %v64
    %101 = vmatprep.subr.mxu0 0.0
    %102 = vmatpush1.xpose.msra.mxu0 %v65
    %103 = vmatprep.subr.mxu0 0.0
    %104 = vmatpush1.xpose.msra.mxu0 %v66
    %105 = vmatprep.subr.mxu0 0.0
    %106 = vmatpush1.xpose.msra.mxu0 %v67
    %107 = vmatprep.subr.mxu0 0.0
    %108 = vmatpush1.xpose.msra.mxu0 %v68
    %109 = vmatprep.subr.mxu0 0.0
    %110 = vmatpush1.xpose.msra.mxu0 %v69
    %111 = vmatprep.subr.mxu0 0.0
    %112 = vmatpush1.xpose.msra.mxu0 %v70
    %113 = vmatprep.subr.mxu0 0.0
    %114 = vmatpush1.xpose.msra.mxu0 %v71
    %115 = vmatprep.subr.mxu0 0.0
    %116 = vmatpush1.xpose.msra.mxu0 %v72
    %117 = vmatprep.subr.mxu0 0.0
    %118 = vmatpush1.xpose.msra.mxu0 %v73
    %119 = vmatprep.subr.mxu0 0.0
    %120 = vmatpush1.xpose.msra.mxu0 %v74
    %121 = vmatprep.subr.mxu0 0.0
    %122 = vmatpush1.xpose.msra.mxu0 0.0
    %123 = vmatprep.subr.mxu0 0.0
    %124 = vmatpush1.xpose.msra.mxu0 0.0
    %125 = vmatprep.subr.mxu0 0.0
    %126 = vmatpush1.xpose.msra.mxu0 0.0
    %127 = vmatprep.subr.mxu0 0.0
    %128 = vmatpush1.xpose.msra.mxu0 0.0
    %129 = vmatprep.subr.mxu0 0.0
    %130 = vmatpush1.xpose.msra.mxu0 0.0
    %131 = vmatprep.subr.mxu0 0.0
    %132 = vmatpush1.xpose.msra.mxu0 0.0
    %133 = vmatprep.subr.mxu0 0.0
    %134 = vmatpush1.xpose.msra.mxu0 0.0
    %135 = vmatprep.subr.mxu0 0.0
    %136 = vmatpush1.xpose.msra.mxu0 0.0
    %137 = vmatprep.subr.mxu0 0.0
    %138 = vmatpush1.xpose.msra.mxu0 0.0
    %139 = vmatprep.subr.mxu0 0.0
    %140 = vmatpush1.xpose.msra.mxu0 0.0
    %141 = vmatprep.subr.mxu0 0.0
    %142 = vmatpush1.xpose.msra.mxu0 0.0
    %143 = vmatprep.subr.mxu0 0.0
    %144 = vmatpush1.xpose.msra.mxu0 0.0
    %145 = vmatprep.subr.mxu0 0.0
    %146 = vmatpush1.xpose.msra.mxu0 0.0
    %147 = vmatprep.subr.mxu0 0.0
    %148 = vmatpush1.xpose.msra.mxu0 0.0
    %149 = vmatprep.subr.mxu0 0.0
    %150 = vmatpush1.xpose.msra.mxu0 0.0
    %151 = vmatprep.subr.mxu0 0.0
    %152 = vmatpush1.xpose.msra.mxu0 0.0
    %153 = vmatprep.mubr.f32.mxu0 0.0
    %154 = vmatmul.mubr.f32.gmra.mrb[0].mxu0 %v58
    %v155 = vpop.f32.mrb[0].mxu0
    %v156 = vadd.f32 %v87, %v155
    %v157 = vpop.f32.mrb[0].mxu0
    %158 = vdwg.mxu0
    %v159 = vld [vmem:[#allocation5] sm:$0xff]
    %v161 = vlaneseq
    %v162 = vshrl.u32 %v161, 7
    %v163 = vsub.s32 0, %v162
    %v164 = vrot.slane %v82, %v163
    %v166 = vmul.f32 %v164, %v159
    %v167 = vsub.f32 %v156, %v166
    %168 = vst [vmem:[#allocation8] sm:$0xff] %v167
    // Predicated region
    $region34: #{tpu_custom_call.1} parent=1 // pred_check
      _
    $region35: #{tpu_custom_call.1} parent=1 // pred_check_branch
      %170 = sbr.rel (0) target = $region37
    $region36: #{tpu_custom_call.1} parent=1 // pred_region
      %s172 = ssub.s32 128, 128
      %173 = vsyncadd [#allocation4], %s172
      %s175 = sshll.u32 [#allocation8], 4
      %s176 = int_to_ptr.vmem [resolvable:$true] %s175
      %178 = dma.vmem_to_hbm [thread:$0]  %s176, 128, %s5, [#allocation4]
    $region37: #{tpu_custom_call.1} parent=1 // pred_fallthru
      _
    // Predicated region
    $region38: #{tpu_custom_call.1} parent=1 // pred_check
      _
    $region39: #{tpu_custom_call.1} parent=1 // pred_check_branch
      %180 = sbr.rel (0) target = $region41
    $region40: #{tpu_custom_call.1} parent=1 // pred_region
      %181 = dma.done [#allocation4], 128
    $region41: #{tpu_custom_call.1} parent=1 // pred_fallthru
      _
    %182 = vsyncpa [#allocation3], 1
    %183 = vsyncpa [#allocation6], 1
    %184 = vsyncpa [#allocation4], 1

</llo_original>
